<compile_context>
chip_gen: v7x
topology: tpu7x:2x2x1
jax: 0.10.0
libtpu: 0.0.40
codegen_flags: <defaults>
</compile_context>

<pallas_src>
import jax
import jax.numpy as jnp
from jax.experimental import pallas as pl
from jax.experimental.pallas import tpu as pltpu

# ---- packed-parameter slab layout (flat f32[64] in SMEM) -------------------
W1_OFF = 0          # 8  : w1[0, j]            (fc1 weight, in=1, out=8)
B1_OFF = 8          # 8  : b1[j]
W2_OFF = 16         # 32 : w2[i, j] at 16+i*4+j (fc2 weight, in=8, out=4)
B2_OFF = 48         # 4  : b2[j]
W3_OFF = 52         # 8  : w3[i, j] at 52+i*2+j (fc3 weight, in=4, out=2)
B3_OFF = 60         # 2  : b3[j]
PARAM_SLAB = 64     # 62 real values, padded to 64


def actor_kernel(p_ref, x_ref, o_ref):
    """p_ref: SMEM f32[64]; x_ref: VMEM (1, BT); o_ref: VMEM (2, BT)."""
    x = x_ref[...]                                   # (1, BT), batch on lanes

    # fc1 (1 -> 8) + ReLU: K == 1, so it is a broadcast FMA on the VPU.
    h1 = [
        jnp.maximum(x * p_ref[W1_OFF + j] + p_ref[B1_OFF + j], 0.0)
        for j in range(8)
    ]

    # fc2 (8 -> 4) + ReLU: unrolled scalar-weight VPU FMAs (no MXU).
    h2 = []
    for j in range(4):
        z = h1[0] * p_ref[W2_OFF + j]
        for i in range(1, 8):
            z = z + h1[i] * p_ref[W2_OFF + i * 4 + j]
        h2.append(jnp.maximum(z + p_ref[B2_OFF + j], 0.0))

    # fc3 (4 -> 2) + numerically-stable sigmoid.
    for j in range(2):
        z = h2[0] * p_ref[W3_OFF + j]
        for i in range(1, 4):
            z = z + h2[i] * p_ref[W3_OFF + i * 2 + j]
        z = z + p_ref[B3_OFF + j]
        e = jnp.exp(-jnp.abs(z))                     # EUP; never overflows
        num = jnp.where(z >= 0.0, 1.0, e)
        o_ref[j:j + 1, :] = num / (1.0 + e)          # sigmoid(z), exact


def actor_forward(x, packed_params):
    """x: (B, 1) float32 -> (B, 2) float32."""
    B = x.shape[0]
    # Lane tile: at least one full 128-lane vreg row, up to 1024 lanes/step.
    if B > 1024:
        bt = 1024
    else:
        bt = max(128, ((B + 127) // 128) * 128)
    bp = ((B + bt - 1) // bt) * bt

    # Lane-dense layout: batch along the last (lane) axis, zero-padded.
    xt = jnp.zeros((1, bp), jnp.float32).at[0, :B].set(
        x[:, 0].astype(jnp.float32))

    out = pl.pallas_call(
        actor_kernel,
        out_shape=jax.ShapeDtypeStruct((2, bp), jnp.float32),
        grid=(bp // bt,),
        in_specs=[
            # one packed parameter slab, resident in SMEM across the grid
            pl.BlockSpec((PARAM_SLAB,), lambda i: (0,),
                         memory_space=pltpu.MemorySpace.SMEM),
            # batch tiles along the lane axis
            pl.BlockSpec((1, bt), lambda i: (0, i)),
        ],
        out_specs=pl.BlockSpec((2, bt), lambda i: (0, i)),
        compiler_params=pltpu.CompilerParams(
            dimension_semantics=("parallel",)),
    )(packed_params, xt)

    return out[:, :B].T                              # (B, 2)


def init_params(key):
    """Deterministic init mimicking nn.Linear default: U(-1/sqrt(fan_in), +)."""
    def linear(key, fan_in, fan_out):
        kw, kb = jax.random.split(key)
        bound = 1.0 / jnp.sqrt(float(fan_in))
        w = jax.random.uniform(kw, (fan_in, fan_out), jnp.float32, -bound, bound)
        b = jax.random.uniform(kb, (fan_out,), jnp.float32, -bound, bound)
        return w, b

    k1, k2, k3 = jax.random.split(key, 3)
    w1, b1 = linear(k1, 1, 8)
    w2, b2 = linear(k2, 8, 4)
    w3, b3 = linear(k3, 4, 2)
    return (w1, b1, w2, b2, w3, b3)


def pack_params(params):
    """Pack the 6 tensors (62 floats) into one f32[64] slab for SMEM."""
    w1, b1, w2, b2, w3, b3 = params
    flat = jnp.concatenate([
        w1.reshape(-1), b1.reshape(-1),
        w2.reshape(-1), b2.reshape(-1),
        w3.reshape(-1), b3.reshape(-1),
    ]).astype(jnp.float32)
    return jnp.zeros((PARAM_SLAB,), jnp.float32).at[:flat.shape[0]].set(flat)


def actor_reference(x, params):
    """Plain-JAX reference of the PyTorch forward (f32; TPU has no f64)."""
    w1, b1, w2, b2, w3, b3 = params
    h = jnp.maximum(x @ w1 + b1, 0.0)
    h = jnp.maximum(h @ w2 + b2, 0.0)
    return jax.nn.sigmoid(h @ w3 + b3)


if __name__ == "__main__":
    key = jax.random.PRNGKey(0)
    kp, kx = jax.random.split(key)

    params = init_params(kp)
    packed = pack_params(params)

    batch = 8
    x = jax.random.normal(kx, (batch, 1), dtype=jnp.float32)  # scalar state

    out = jax.block_until_ready(actor_forward(x, packed))

    ref = actor_reference(x, params)
    assert out.shape == (batch, 2), out.shape
    assert jnp.allclose(out, ref, atol=1e-5, rtol=1e-5), (out, ref)
    assert bool(jnp.all((out >= 0.0) & (out <= 1.0)))  # sigmoid range

    print("KERNEL_OK")
</pallas_src>

<mosaic_0001>
module attributes {stable_mosaic.version = 11 : i64} {
  func.func @actor_kernel(%arg0: i32, %arg1: memref<64xf32, #tpu.memory_space<smem>>, %arg2: memref<1x128xf32, #tpu.memory_space<vmem>>, %arg3: memref<2x128xf32, #tpu.memory_space<vmem>>) attributes {dimension_semantics = [#tpu.dimension_semantics<parallel>], iteration_bounds = array<i64: 1>, scalar_prefetch = 0 : i64, scratch_operands = 0 : i64, tpu.core_type = #tpu.core_type<tc>, window_params = [{transform_indices = @transform_0, window_bounds = array<i64: 64>}, {transform_indices = @transform_1, window_bounds = array<i64: 1, 128>}, {transform_indices = @transform_2, window_bounds = array<i64: 2, 128>}]} {
    %c0 = arith.constant 0 : index
    %c0_0 = arith.constant 0 : index
    %0 = vector.load %arg2[%c0, %c0_0] : memref<1x128xf32, #tpu.memory_space<vmem>>, vector<1x128xf32>
    %c0_1 = arith.constant 0 : index
    %1 = memref.load %arg1[%c0_1] : memref<64xf32, #tpu.memory_space<smem>>
    %2 = vector.broadcast %1 : f32 to vector<1x128xf32>
    %3 = arith.mulf %0, %2 : vector<1x128xf32>
    %c8 = arith.constant 8 : index
    %4 = memref.load %arg1[%c8] : memref<64xf32, #tpu.memory_space<smem>>
    %5 = vector.broadcast %4 : f32 to vector<1x128xf32>
    %6 = arith.addf %3, %5 : vector<1x128xf32>
    %cst = arith.constant 0.000000e+00 : f32
    %7 = vector.broadcast %cst : f32 to vector<1x128xf32>
    %8 = arith.maximumf %6, %7 : vector<1x128xf32>
    %c1 = arith.constant 1 : index
    %9 = memref.load %arg1[%c1] : memref<64xf32, #tpu.memory_space<smem>>
    %10 = vector.broadcast %9 : f32 to vector<1x128xf32>
    %11 = arith.mulf %0, %10 : vector<1x128xf32>
    %c9 = arith.constant 9 : index
    %12 = memref.load %arg1[%c9] : memref<64xf32, #tpu.memory_space<smem>>
    %13 = vector.broadcast %12 : f32 to vector<1x128xf32>
    %14 = arith.addf %11, %13 : vector<1x128xf32>
    %cst_2 = arith.constant 0.000000e+00 : f32
    %15 = vector.broadcast %cst_2 : f32 to vector<1x128xf32>
    %16 = arith.maximumf %14, %15 : vector<1x128xf32>
    %c2 = arith.constant 2 : index
    %17 = memref.load %arg1[%c2] : memref<64xf32, #tpu.memory_space<smem>>
    %18 = vector.broadcast %17 : f32 to vector<1x128xf32>
    %19 = arith.mulf %0, %18 : vector<1x128xf32>
    %c10 = arith.constant 10 : index
    %20 = memref.load %arg1[%c10] : memref<64xf32, #tpu.memory_space<smem>>
    %21 = vector.broadcast %20 : f32 to vector<1x128xf32>
    %22 = arith.addf %19, %21 : vector<1x128xf32>
    %cst_3 = arith.constant 0.000000e+00 : f32
    %23 = vector.broadcast %cst_3 : f32 to vector<1x128xf32>
    %24 = arith.maximumf %22, %23 : vector<1x128xf32>
    %c3 = arith.constant 3 : index
    %25 = memref.load %arg1[%c3] : memref<64xf32, #tpu.memory_space<smem>>
    %26 = vector.broadcast %25 : f32 to vector<1x128xf32>
    %27 = arith.mulf %0, %26 : vector<1x128xf32>
    %c11 = arith.constant 11 : index
    %28 = memref.load %arg1[%c11] : memref<64xf32, #tpu.memory_space<smem>>
    %29 = vector.broadcast %28 : f32 to vector<1x128xf32>
    %30 = arith.addf %27, %29 : vector<1x128xf32>
    %cst_4 = arith.constant 0.000000e+00 : f32
    %31 = vector.broadcast %cst_4 : f32 to vector<1x128xf32>
    %32 = arith.maximumf %30, %31 : vector<1x128xf32>
    %c4 = arith.constant 4 : index
    %33 = memref.load %arg1[%c4] : memref<64xf32, #tpu.memory_space<smem>>
    %34 = vector.broadcast %33 : f32 to vector<1x128xf32>
    %35 = arith.mulf %0, %34 : vector<1x128xf32>
    %c12 = arith.constant 12 : index
    %36 = memref.load %arg1[%c12] : memref<64xf32, #tpu.memory_space<smem>>
    %37 = vector.broadcast %36 : f32 to vector<1x128xf32>
    %38 = arith.addf %35, %37 : vector<1x128xf32>
    %cst_5 = arith.constant 0.000000e+00 : f32
    %39 = vector.broadcast %cst_5 : f32 to vector<1x128xf32>
    %40 = arith.maximumf %38, %39 : vector<1x128xf32>
    %c5 = arith.constant 5 : index
    %41 = memref.load %arg1[%c5] : memref<64xf32, #tpu.memory_space<smem>>
    %42 = vector.broadcast %41 : f32 to vector<1x128xf32>
    %43 = arith.mulf %0, %42 : vector<1x128xf32>
    %c13 = arith.constant 13 : index
    %44 = memref.load %arg1[%c13] : memref<64xf32, #tpu.memory_space<smem>>
    %45 = vector.broadcast %44 : f32 to vector<1x128xf32>
    %46 = arith.addf %43, %45 : vector<1x128xf32>
    %cst_6 = arith.constant 0.000000e+00 : f32
    %47 = vector.broadcast %cst_6 : f32 to vector<1x128xf32>
    %48 = arith.maximumf %46, %47 : vector<1x128xf32>
    %c6 = arith.constant 6 : index
    %49 = memref.load %arg1[%c6] : memref<64xf32, #tpu.memory_space<smem>>
    %50 = vector.broadcast %49 : f32 to vector<1x128xf32>
    %51 = arith.mulf %0, %50 : vector<1x128xf32>
    %c14 = arith.constant 14 : index
    %52 = memref.load %arg1[%c14] : memref<64xf32, #tpu.memory_space<smem>>
    %53 = vector.broadcast %52 : f32 to vector<1x128xf32>
    %54 = arith.addf %51, %53 : vector<1x128xf32>
    %cst_7 = arith.constant 0.000000e+00 : f32
    %55 = vector.broadcast %cst_7 : f32 to vector<1x128xf32>
    %56 = arith.maximumf %54, %55 : vector<1x128xf32>
    %c7 = arith.constant 7 : index
    %57 = memref.load %arg1[%c7] : memref<64xf32, #tpu.memory_space<smem>>
    %58 = vector.broadcast %57 : f32 to vector<1x128xf32>
    %59 = arith.mulf %0, %58 : vector<1x128xf32>
    %c15 = arith.constant 15 : index
    %60 = memref.load %arg1[%c15] : memref<64xf32, #tpu.memory_space<smem>>
    %61 = vector.broadcast %60 : f32 to vector<1x128xf32>
    %62 = arith.addf %59, %61 : vector<1x128xf32>
    %cst_8 = arith.constant 0.000000e+00 : f32
    %63 = vector.broadcast %cst_8 : f32 to vector<1x128xf32>
    %64 = arith.maximumf %62, %63 : vector<1x128xf32>
    %c16 = arith.constant 16 : index
    %65 = memref.load %arg1[%c16] : memref<64xf32, #tpu.memory_space<smem>>
    %66 = vector.broadcast %65 : f32 to vector<1x128xf32>
    %67 = arith.mulf %8, %66 : vector<1x128xf32>
    %c20 = arith.constant 20 : index
    %68 = memref.load %arg1[%c20] : memref<64xf32, #tpu.memory_space<smem>>
    %69 = vector.broadcast %68 : f32 to vector<1x128xf32>
    %70 = arith.mulf %16, %69 : vector<1x128xf32>
    %71 = arith.addf %67, %70 : vector<1x128xf32>
    %c24 = arith.constant 24 : index
    %72 = memref.load %arg1[%c24] : memref<64xf32, #tpu.memory_space<smem>>
    %73 = vector.broadcast %72 : f32 to vector<1x128xf32>
    %74 = arith.mulf %24, %73 : vector<1x128xf32>
    %75 = arith.addf %71, %74 : vector<1x128xf32>
    %c28 = arith.constant 28 : index
    %76 = memref.load %arg1[%c28] : memref<64xf32, #tpu.memory_space<smem>>
    %77 = vector.broadcast %76 : f32 to vector<1x128xf32>
    %78 = arith.mulf %32, %77 : vector<1x128xf32>
    %79 = arith.addf %75, %78 : vector<1x128xf32>
    %c32 = arith.constant 32 : index
    %80 = memref.load %arg1[%c32] : memref<64xf32, #tpu.memory_space<smem>>
    %81 = vector.broadcast %80 : f32 to vector<1x128xf32>
    %82 = arith.mulf %40, %81 : vector<1x128xf32>
    %83 = arith.addf %79, %82 : vector<1x128xf32>
    %c36 = arith.constant 36 : index
    %84 = memref.load %arg1[%c36] : memref<64xf32, #tpu.memory_space<smem>>
    %85 = vector.broadcast %84 : f32 to vector<1x128xf32>
    %86 = arith.mulf %48, %85 : vector<1x128xf32>
    %87 = arith.addf %83, %86 : vector<1x128xf32>
    %c40 = arith.constant 40 : index
    %88 = memref.load %arg1[%c40] : memref<64xf32, #tpu.memory_space<smem>>
    %89 = vector.broadcast %88 : f32 to vector<1x128xf32>
    %90 = arith.mulf %56, %89 : vector<1x128xf32>
    %91 = arith.addf %87, %90 : vector<1x128xf32>
    %c44 = arith.constant 44 : index
    %92 = memref.load %arg1[%c44] : memref<64xf32, #tpu.memory_space<smem>>
    %93 = vector.broadcast %92 : f32 to vector<1x128xf32>
    %94 = arith.mulf %64, %93 : vector<1x128xf32>
    %95 = arith.addf %91, %94 : vector<1x128xf32>
    %c48 = arith.constant 48 : index
    %96 = memref.load %arg1[%c48] : memref<64xf32, #tpu.memory_space<smem>>
    %97 = vector.broadcast %96 : f32 to vector<1x128xf32>
    %98 = arith.addf %95, %97 : vector<1x128xf32>
    %cst_9 = arith.constant 0.000000e+00 : f32
    %99 = vector.broadcast %cst_9 : f32 to vector<1x128xf32>
    %100 = arith.maximumf %98, %99 : vector<1x128xf32>
    %c17 = arith.constant 17 : index
    %101 = memref.load %arg1[%c17] : memref<64xf32, #tpu.memory_space<smem>>
    %102 = vector.broadcast %101 : f32 to vector<1x128xf32>
    %103 = arith.mulf %8, %102 : vector<1x128xf32>
    %c21 = arith.constant 21 : index
    %104 = memref.load %arg1[%c21] : memref<64xf32, #tpu.memory_space<smem>>
    %105 = vector.broadcast %104 : f32 to vector<1x128xf32>
    %106 = arith.mulf %16, %105 : vector<1x128xf32>
    %107 = arith.addf %103, %106 : vector<1x128xf32>
    %c25 = arith.constant 25 : index
    %108 = memref.load %arg1[%c25] : memref<64xf32, #tpu.memory_space<smem>>
    %109 = vector.broadcast %108 : f32 to vector<1x128xf32>
    %110 = arith.mulf %24, %109 : vector<1x128xf32>
    %111 = arith.addf %107, %110 : vector<1x128xf32>
    %c29 = arith.constant 29 : index
    %112 = memref.load %arg1[%c29] : memref<64xf32, #tpu.memory_space<smem>>
    %113 = vector.broadcast %112 : f32 to vector<1x128xf32>
    %114 = arith.mulf %32, %113 : vector<1x128xf32>
    %115 = arith.addf %111, %114 : vector<1x128xf32>
    %c33 = arith.constant 33 : index
    %116 = memref.load %arg1[%c33] : memref<64xf32, #tpu.memory_space<smem>>
    %117 = vector.broadcast %116 : f32 to vector<1x128xf32>
    %118 = arith.mulf %40, %117 : vector<1x128xf32>
    %119 = arith.addf %115, %118 : vector<1x128xf32>
    %c37 = arith.constant 37 : index
    %120 = memref.load %arg1[%c37] : memref<64xf32, #tpu.memory_space<smem>>
    %121 = vector.broadcast %120 : f32 to vector<1x128xf32>
    %122 = arith.mulf %48, %121 : vector<1x128xf32>
    %123 = arith.addf %119, %122 : vector<1x128xf32>
    %c41 = arith.constant 41 : index
    %124 = memref.load %arg1[%c41] : memref<64xf32, #tpu.memory_space<smem>>
    %125 = vector.broadcast %124 : f32 to vector<1x128xf32>
    %126 = arith.mulf %56, %125 : vector<1x128xf32>
    %127 = arith.addf %123, %126 : vector<1x128xf32>
    %c45 = arith.constant 45 : index
    %128 = memref.load %arg1[%c45] : memref<64xf32, #tpu.memory_space<smem>>
    %129 = vector.broadcast %128 : f32 to vector<1x128xf32>
    %130 = arith.mulf %64, %129 : vector<1x128xf32>
    %131 = arith.addf %127, %130 : vector<1x128xf32>
    %c49 = arith.constant 49 : index
    %132 = memref.load %arg1[%c49] : memref<64xf32, #tpu.memory_space<smem>>
    %133 = vector.broadcast %132 : f32 to vector<1x128xf32>
    %134 = arith.addf %131, %133 : vector<1x128xf32>
    %cst_10 = arith.constant 0.000000e+00 : f32
    %135 = vector.broadcast %cst_10 : f32 to vector<1x128xf32>
    %136 = arith.maximumf %134, %135 : vector<1x128xf32>
    %c18 = arith.constant 18 : index
    %137 = memref.load %arg1[%c18] : memref<64xf32, #tpu.memory_space<smem>>
    %138 = vector.broadcast %137 : f32 to vector<1x128xf32>
    %139 = arith.mulf %8, %138 : vector<1x128xf32>
    %c22 = arith.constant 22 : index
    %140 = memref.load %arg1[%c22] : memref<64xf32, #tpu.memory_space<smem>>
    %141 = vector.broadcast %140 : f32 to vector<1x128xf32>
    %142 = arith.mulf %16, %141 : vector<1x128xf32>
    %143 = arith.addf %139, %142 : vector<1x128xf32>
    %c26 = arith.constant 26 : index
    %144 = memref.load %arg1[%c26] : memref<64xf32, #tpu.memory_space<smem>>
    %145 = vector.broadcast %144 : f32 to vector<1x128xf32>
    %146 = arith.mulf %24, %145 : vector<1x128xf32>
    %147 = arith.addf %143, %146 : vector<1x128xf32>
    %c30 = arith.constant 30 : index
    %148 = memref.load %arg1[%c30] : memref<64xf32, #tpu.memory_space<smem>>
    %149 = vector.broadcast %148 : f32 to vector<1x128xf32>
    %150 = arith.mulf %32, %149 : vector<1x128xf32>
    %151 = arith.addf %147, %150 : vector<1x128xf32>
    %c34 = arith.constant 34 : index
    %152 = memref.load %arg1[%c34] : memref<64xf32, #tpu.memory_space<smem>>
    %153 = vector.broadcast %152 : f32 to vector<1x128xf32>
    %154 = arith.mulf %40, %153 : vector<1x128xf32>
    %155 = arith.addf %151, %154 : vector<1x128xf32>
    %c38 = arith.constant 38 : index
    %156 = memref.load %arg1[%c38] : memref<64xf32, #tpu.memory_space<smem>>
    %157 = vector.broadcast %156 : f32 to vector<1x128xf32>
    %158 = arith.mulf %48, %157 : vector<1x128xf32>
    %159 = arith.addf %155, %158 : vector<1x128xf32>
    %c42 = arith.constant 42 : index
    %160 = memref.load %arg1[%c42] : memref<64xf32, #tpu.memory_space<smem>>
    %161 = vector.broadcast %160 : f32 to vector<1x128xf32>
    %162 = arith.mulf %56, %161 : vector<1x128xf32>
    %163 = arith.addf %159, %162 : vector<1x128xf32>
    %c46 = arith.constant 46 : index
    %164 = memref.load %arg1[%c46] : memref<64xf32, #tpu.memory_space<smem>>
    %165 = vector.broadcast %164 : f32 to vector<1x128xf32>
    %166 = arith.mulf %64, %165 : vector<1x128xf32>
    %167 = arith.addf %163, %166 : vector<1x128xf32>
    %c50 = arith.constant 50 : index
    %168 = memref.load %arg1[%c50] : memref<64xf32, #tpu.memory_space<smem>>
    %169 = vector.broadcast %168 : f32 to vector<1x128xf32>
    %170 = arith.addf %167, %169 : vector<1x128xf32>
    %cst_11 = arith.constant 0.000000e+00 : f32
    %171 = vector.broadcast %cst_11 : f32 to vector<1x128xf32>
    %172 = arith.maximumf %170, %171 : vector<1x128xf32>
    %c19 = arith.constant 19 : index
    %173 = memref.load %arg1[%c19] : memref<64xf32, #tpu.memory_space<smem>>
    %174 = vector.broadcast %173 : f32 to vector<1x128xf32>
    %175 = arith.mulf %8, %174 : vector<1x128xf32>
    %c23 = arith.constant 23 : index
    %176 = memref.load %arg1[%c23] : memref<64xf32, #tpu.memory_space<smem>>
    %177 = vector.broadcast %176 : f32 to vector<1x128xf32>
    %178 = arith.mulf %16, %177 : vector<1x128xf32>
    %179 = arith.addf %175, %178 : vector<1x128xf32>
    %c27 = arith.constant 27 : index
    %180 = memref.load %arg1[%c27] : memref<64xf32, #tpu.memory_space<smem>>
    %181 = vector.broadcast %180 : f32 to vector<1x128xf32>
    %182 = arith.mulf %24, %181 : vector<1x128xf32>
    %183 = arith.addf %179, %182 : vector<1x128xf32>
    %c31 = arith.constant 31 : index
    %184 = memref.load %arg1[%c31] : memref<64xf32, #tpu.memory_space<smem>>
    %185 = vector.broadcast %184 : f32 to vector<1x128xf32>
    %186 = arith.mulf %32, %185 : vector<1x128xf32>
    %187 = arith.addf %183, %186 : vector<1x128xf32>
    %c35 = arith.constant 35 : index
    %188 = memref.load %arg1[%c35] : memref<64xf32, #tpu.memory_space<smem>>
    %189 = vector.broadcast %188 : f32 to vector<1x128xf32>
    %190 = arith.mulf %40, %189 : vector<1x128xf32>
    %191 = arith.addf %187, %190 : vector<1x128xf32>
    %c39 = arith.constant 39 : index
    %192 = memref.load %arg1[%c39] : memref<64xf32, #tpu.memory_space<smem>>
    %193 = vector.broadcast %192 : f32 to vector<1x128xf32>
    %194 = arith.mulf %48, %193 : vector<1x128xf32>
    %195 = arith.addf %191, %194 : vector<1x128xf32>
    %c43 = arith.constant 43 : index
    %196 = memref.load %arg1[%c43] : memref<64xf32, #tpu.memory_space<smem>>
    %197 = vector.broadcast %196 : f32 to vector<1x128xf32>
    %198 = arith.mulf %56, %197 : vector<1x128xf32>
    %199 = arith.addf %195, %198 : vector<1x128xf32>
    %c47 = arith.constant 47 : index
    %200 = memref.load %arg1[%c47] : memref<64xf32, #tpu.memory_space<smem>>
    %201 = vector.broadcast %200 : f32 to vector<1x128xf32>
    %202 = arith.mulf %64, %201 : vector<1x128xf32>
    %203 = arith.addf %199, %202 : vector<1x128xf32>
    %c51 = arith.constant 51 : index
    %204 = memref.load %arg1[%c51] : memref<64xf32, #tpu.memory_space<smem>>
    %205 = vector.broadcast %204 : f32 to vector<1x128xf32>
    %206 = arith.addf %203, %205 : vector<1x128xf32>
    %cst_12 = arith.constant 0.000000e+00 : f32
    %207 = vector.broadcast %cst_12 : f32 to vector<1x128xf32>
    %208 = arith.maximumf %206, %207 : vector<1x128xf32>
    %c52 = arith.constant 52 : index
    %209 = memref.load %arg1[%c52] : memref<64xf32, #tpu.memory_space<smem>>
    %210 = vector.broadcast %209 : f32 to vector<1x128xf32>
    %211 = arith.mulf %100, %210 : vector<1x128xf32>
    %c54 = arith.constant 54 : index
    %212 = memref.load %arg1[%c54] : memref<64xf32, #tpu.memory_space<smem>>
    %213 = vector.broadcast %212 : f32 to vector<1x128xf32>
    %214 = arith.mulf %136, %213 : vector<1x128xf32>
    %215 = arith.addf %211, %214 : vector<1x128xf32>
    %c56 = arith.constant 56 : index
    %216 = memref.load %arg1[%c56] : memref<64xf32, #tpu.memory_space<smem>>
    %217 = vector.broadcast %216 : f32 to vector<1x128xf32>
    %218 = arith.mulf %172, %217 : vector<1x128xf32>
    %219 = arith.addf %215, %218 : vector<1x128xf32>
    %c58 = arith.constant 58 : index
    %220 = memref.load %arg1[%c58] : memref<64xf32, #tpu.memory_space<smem>>
    %221 = vector.broadcast %220 : f32 to vector<1x128xf32>
    %222 = arith.mulf %208, %221 : vector<1x128xf32>
    %223 = arith.addf %219, %222 : vector<1x128xf32>
    %c60 = arith.constant 60 : index
    %224 = memref.load %arg1[%c60] : memref<64xf32, #tpu.memory_space<smem>>
    %225 = vector.broadcast %224 : f32 to vector<1x128xf32>
    %226 = arith.addf %223, %225 : vector<1x128xf32>
    %227 = math.absf %226 : vector<1x128xf32>
    %cst_13 = arith.constant 0.000000e+00 : f32
    %228 = vector.broadcast %cst_13 : f32 to vector<1x128xf32>
    %229 = arith.subf %228, %227 : vector<1x128xf32>
    %230 = math.exp %229 : vector<1x128xf32>
    %cst_14 = arith.constant 0.000000e+00 : f32
    %231 = vector.broadcast %cst_14 : f32 to vector<1x128xf32>
    %232 = arith.cmpf oge, %226, %231 : vector<1x128xf32>
    %cst_15 = arith.constant 1.000000e+00 : f32
    %233 = vector.broadcast %cst_15 : f32 to vector<1x128xf32>
    %234 = arith.select %232, %233, %230 : vector<1x128xi1>, vector<1x128xf32>
    %cst_16 = arith.constant 1.000000e+00 : f32
    %235 = vector.broadcast %cst_16 : f32 to vector<1x128xf32>
    %236 = arith.addf %235, %230 : vector<1x128xf32>
    %237 = arith.divf %234, %236 : vector<1x128xf32>
    %c0_17 = arith.constant 0 : index
    %c0_18 = arith.constant 0 : index
    %238 = vector.load %arg3[%c0_17, %c0_18] : memref<2x128xf32, #tpu.memory_space<vmem>>, vector<1x128xf32>
    tpu.vector_store %arg3[%c0_17, %c0_18], %237 {strides = array<i32>} : memref<2x128xf32, #tpu.memory_space<vmem>>, vector<1x128xf32>,
    %c53 = arith.constant 53 : index
    %239 = memref.load %arg1[%c53] : memref<64xf32, #tpu.memory_space<smem>>
    %240 = vector.broadcast %239 : f32 to vector<1x128xf32>
    %241 = arith.mulf %100, %240 : vector<1x128xf32>
    %c55 = arith.constant 55 : index
    %242 = memref.load %arg1[%c55] : memref<64xf32, #tpu.memory_space<smem>>
    %243 = vector.broadcast %242 : f32 to vector<1x128xf32>
    %244 = arith.mulf %136, %243 : vector<1x128xf32>
    %245 = arith.addf %241, %244 : vector<1x128xf32>
    %c57 = arith.constant 57 : index
    %246 = memref.load %arg1[%c57] : memref<64xf32, #tpu.memory_space<smem>>
    %247 = vector.broadcast %246 : f32 to vector<1x128xf32>
    %248 = arith.mulf %172, %247 : vector<1x128xf32>
    %249 = arith.addf %245, %248 : vector<1x128xf32>
    %c59 = arith.constant 59 : index
    %250 = memref.load %arg1[%c59] : memref<64xf32, #tpu.memory_space<smem>>
    %251 = vector.broadcast %250 : f32 to vector<1x128xf32>
    %252 = arith.mulf %208, %251 : vector<1x128xf32>
    %253 = arith.addf %249, %252 : vector<1x128xf32>
    %c61 = arith.constant 61 : index
    %254 = memref.load %arg1[%c61] : memref<64xf32, #tpu.memory_space<smem>>
    %255 = vector.broadcast %254 : f32 to vector<1x128xf32>
    %256 = arith.addf %253, %255 : vector<1x128xf32>
    %257 = math.absf %256 : vector<1x128xf32>
    %cst_19 = arith.constant 0.000000e+00 : f32
    %258 = vector.broadcast %cst_19 : f32 to vector<1x128xf32>
    %259 = arith.subf %258, %257 : vector<1x128xf32>
    %260 = math.exp %259 : vector<1x128xf32>
    %cst_20 = arith.constant 0.000000e+00 : f32
    %261 = vector.broadcast %cst_20 : f32 to vector<1x128xf32>
    %262 = arith.cmpf oge, %256, %261 : vector<1x128xf32>
    %cst_21 = arith.constant 1.000000e+00 : f32
    %263 = vector.broadcast %cst_21 : f32 to vector<1x128xf32>
    %264 = arith.select %262, %263, %260 : vector<1x128xi1>, vector<1x128xf32>
    %cst_22 = arith.constant 1.000000e+00 : f32
    %265 = vector.broadcast %cst_22 : f32 to vector<1x128xf32>
    %266 = arith.addf %265, %260 : vector<1x128xf32>
    %267 = arith.divf %264, %266 : vector<1x128xf32>
    %c1_23 = arith.constant 1 : index
    %c0_24 = arith.constant 0 : index
    %268 = vector.load %arg3[%c1_23, %c0_24] : memref<2x128xf32, #tpu.memory_space<vmem>>, vector<1x128xf32>
    tpu.vector_store %arg3[%c1_23, %c0_24], %267 {strides = array<i32>} : memref<2x128xf32, #tpu.memory_space<vmem>>, vector<1x128xf32>,
    return
  }
  func.func @transform_0(%arg0: i32) -> i32 {
    %c0_i32 = arith.constant 0 : i32
    %c0_i32_0 = arith.constant 0 : i32
    return %c0_i32 : i32
  }
  func.func @transform_1(%arg0: i32) -> (i32, i32) {
    %c0_i32 = arith.constant 0 : i32
    %c0_i32_0 = arith.constant 0 : i32
    return %c0_i32, %arg0 : i32, i32
  }
  func.func @transform_2(%arg0: i32) -> (i32, i32) {
    %c0_i32 = arith.constant 0 : i32
    %c0_i32_0 = arith.constant 0 : i32
    return %c0_i32, %arg0 : i32, i32
  }
}

</mosaic_0001>

<llo_original>
// kernel: tpu_custom_call.1
$region0: #{tpu_custom_call.1}
  #allocation0 [shape = 'u32[]', space=smem, size = 0x4, offset = 0x4, fixed_abs, tag = 'smem constant byte address 0x4 - core index']
  #allocation1 [shape = 'u32[144,128]{1,0:T(1,128)}', space=vmem, size = 0x12000, scoped, tag = 'internal scratch']
  %s0 = inlined_call_operand.hbm [shape: f32[64], index: 0, kind: input, shape index: {}]
  %s1 = inlined_call_operand.vmem [shape: f32[1,128], index: 1, kind: input, shape index: {}]
  %s2 = inlined_call_operand.hbm [shape: f32[2,128], index: 2, kind: output, shape index: {}]
  %s3 = sld [smem:[#allocation0]]
  $region22: #{tpu_custom_call.1} parent=0
    _
  %s5 = ssub.s32 1, %s3
  %s6 = scalar_select 0, %s5, %s3
  $region1: #{tpu_custom_call.1} parent=0
    #allocation2 [shape = 'u8[512]{0}', space=smem, size = 0x200, scoped, tag = 'input window, operand 0, single buffered']
    #allocation3 [shape = 's32[1]{0}', space=sflag, size = 0x4, scoped, tag = 'scoped memory for tpu_custom_call.1']
    #allocation4 [shape = 's32[1]{0}', space=sflag, size = 0x4, scoped, tag = 'scoped memory for tpu_custom_call.1']
    #allocation5 [shape = 'u8[1024]{0}', space=vmem, size = 0x400, scoped, tag = 'output window, operand 0, single buffered']
    %7 = vsyncpa [#allocation4], 0
    %8 = vsyncpa [#allocation3], 0
    // Predicated region
    $region2: #{tpu_custom_call.1} parent=1 // pred_check
      _
    $region3: #{tpu_custom_call.1} parent=1 // pred_check_branch
      %10 = sbr.rel (0) target = $region5
    $region4: #{tpu_custom_call.1} parent=1 // pred_region
      %s12 = ssub.s32 16, 16
      %13 = vsyncadd [#allocation4], %s12
      %16 = dma.hbm_to_smem %s0, 16, [#allocation2], [#allocation4]
    $region5: #{tpu_custom_call.1} parent=1 // pred_fallthru
      _
    // Predicated region
    $region6: #{tpu_custom_call.1} parent=1 // pred_check
      _
    $region7: #{tpu_custom_call.1} parent=1 // pred_check_branch
      %18 = sbr.rel (0) target = $region9
    $region8: #{tpu_custom_call.1} parent=1 // pred_region
      _
    $region9: #{tpu_custom_call.1} parent=1 // pred_fallthru
      _
    // Predicated region
    $region10: #{tpu_custom_call.1} parent=1 // pred_check
      _
    $region11: #{tpu_custom_call.1} parent=1 // pred_check_branch
      %20 = sbr.rel (0) target = $region13
    $region12: #{tpu_custom_call.1} parent=1 // pred_region
      %21 = dma.done [#allocation4], 16
    $region13: #{tpu_custom_call.1} parent=1 // pred_fallthru
      _
    %22 = sfence
    %v23 = vld [vmem:[%s1] sm:$0x1]
    %s24 = sld [smem:[#allocation2]]
    %v25 = vstv %s24
    %v26 = vmul.f32 %v23, %v25
    %s27 = sld [smem:[#allocation2 + $0x8]]
    %v28 = vstv %s27
    %v29 = vadd.f32 %v26, %v28
    %v30 = vmax.f32 %v29, 0.0
    %s31 = sld [smem:[#allocation2 + $0x1]]
    %v32 = vstv %s31
    %v33 = vmul.f32 %v23, %v32
    %s34 = sld [smem:[#allocation2 + $0x9]]
    %v35 = vstv %s34
    %v36 = vadd.f32 %v33, %v35
    %v37 = vmax.f32 %v36, 0.0
    %s38 = sld [smem:[#allocation2 + $0x2]]
    %v39 = vstv %s38
    %v40 = vmul.f32 %v23, %v39
    %s41 = sld [smem:[#allocation2 + $0xa]]
    %v42 = vstv %s41
    %v43 = vadd.f32 %v40, %v42
    %v44 = vmax.f32 %v43, 0.0
    %s45 = sld [smem:[#allocation2 + $0x3]]
    %v46 = vstv %s45
    %v47 = vmul.f32 %v23, %v46
    %s48 = sld [smem:[#allocation2 + $0xb]]
    %v49 = vstv %s48
    %v50 = vadd.f32 %v47, %v49
    %v51 = vmax.f32 %v50, 0.0
    %s52 = sld [smem:[#allocation2 + $0x4]]
    %v53 = vstv %s52
    %v54 = vmul.f32 %v23, %v53
    %s55 = sld [smem:[#allocation2 + $0xc]]
    %v56 = vstv %s55
    %v57 = vadd.f32 %v54, %v56
    %v58 = vmax.f32 %v57, 0.0
    %s59 = sld [smem:[#allocation2 + $0x5]]
    %v60 = vstv %s59
    %v61 = vmul.f32 %v23, %v60
    %s62 = sld [smem:[#allocation2 + $0xd]]
    %v63 = vstv %s62
    %v64 = vadd.f32 %v61, %v63
    %v65 = vmax.f32 %v64, 0.0
    %s66 = sld [smem:[#allocation2 + $0x6]]
    %v67 = vstv %s66
    %v68 = vmul.f32 %v23, %v67
    %s69 = sld [smem:[#allocation2 + $0xe]]
    %v70 = vstv %s69
    %v71 = vadd.f32 %v68, %v70
    %v72 = vmax.f32 %v71, 0.0
    %s73 = sld [smem:[#allocation2 + $0x7]]
    %v74 = vstv %s73
    %v75 = vmul.f32 %v23, %v74
    %s76 = sld [smem:[#allocation2 + $0xf]]
    %v77 = vstv %s76
    %v78 = vadd.f32 %v75, %v77
    %v79 = vmax.f32 %v78, 0.0
    %s80 = sld [smem:[#allocation2 + $0x10]]
    %v81 = vstv %s80
    %v82 = vmul.f32 %v30, %v81
    %s83 = sld [smem:[#allocation2 + $0x14]]
    %v84 = vstv %s83
    %v85 = vmul.f32 %v37, %v84
    %v86 = vadd.f32 %v82, %v85
    %s87 = sld [smem:[#allocation2 + $0x18]]
    %v88 = vstv %s87
    %v89 = vmul.f32 %v44, %v88
    %v90 = vadd.f32 %v86, %v89
    %s91 = sld [smem:[#allocation2 + $0x1c]]
    %v92 = vstv %s91
    %v93 = vmul.f32 %v51, %v92
    %v94 = vadd.f32 %v90, %v93
    %s95 = sld [smem:[#allocation2 + $0x20]]
    %v96 = vstv %s95
    %v97 = vmul.f32 %v58, %v96
    %v98 = vadd.f32 %v94, %v97
    %s99 = sld [smem:[#allocation2 + $0x24]]
    %v100 = vstv %s99
    %v101 = vmul.f32 %v65, %v100
    %v102 = vadd.f32 %v98, %v101
    %s103 = sld [smem:[#allocation2 + $0x28]]
    %v104 = vstv %s103
    %v105 = vmul.f32 %v72, %v104
    %v106 = vadd.f32 %v102, %v105
    %s107 = sld [smem:[#allocation2 + $0x2c]]
    %v108 = vstv %s107
    %v109 = vmul.f32 %v79, %v108
    %v110 = vadd.f32 %v106, %v109
    %s111 = sld [smem:[#allocation2 + $0x30]]
    %v112 = vstv %s111
    %v113 = vadd.f32 %v110, %v112
    %v114 = vmax.f32 %v113, 0.0
    %s115 = sld [smem:[#allocation2 + $0x11]]
    %v116 = vstv %s115
    %v117 = vmul.f32 %v30, %v116
    %s118 = sld [smem:[#allocation2 + $0x15]]
    %v119 = vstv %s118
    %v120 = vmul.f32 %v37, %v119
    %v121 = vadd.f32 %v117, %v120
    %s122 = sld [smem:[#allocation2 + $0x19]]
    %v123 = vstv %s122
    %v124 = vmul.f32 %v44, %v123
    %v125 = vadd.f32 %v121, %v124
    %s126 = sld [smem:[#allocation2 + $0x1d]]
    %v127 = vstv %s126
    %v128 = vmul.f32 %v51, %v127
    %v129 = vadd.f32 %v125, %v128
    %s130 = sld [smem:[#allocation2 + $0x21]]
    %v131 = vstv %s130
    %v132 = vmul.f32 %v58, %v131
    %v133 = vadd.f32 %v129, %v132
    %s134 = sld [smem:[#allocation2 + $0x25]]
    %v135 = vstv %s134
    %v136 = vmul.f32 %v65, %v135
    %v137 = vadd.f32 %v133, %v136
    %s138 = sld [smem:[#allocation2 + $0x29]]
    %v139 = vstv %s138
    %v140 = vmul.f32 %v72, %v139
    %v141 = vadd.f32 %v137, %v140
    %s142 = sld [smem:[#allocation2 + $0x2d]]
    %v143 = vstv %s142
    %v144 = vmul.f32 %v79, %v143
    %v145 = vadd.f32 %v141, %v144
    %s146 = sld [smem:[#allocation2 + $0x31]]
    %v147 = vstv %s146
    %v148 = vadd.f32 %v145, %v147
    %v149 = vmax.f32 %v148, 0.0
    %s150 = sld [smem:[#allocation2 + $0x12]]
    %v151 = vstv %s150
    %v152 = vmul.f32 %v30, %v151
    %s153 = sld [smem:[#allocation2 + $0x16]]
    %v154 = vstv %s153
    %v155 = vmul.f32 %v37, %v154
    %v156 = vadd.f32 %v152, %v155
    %s157 = sld [smem:[#allocation2 + $0x1a]]
    %v158 = vstv %s157
    %v159 = vmul.f32 %v44, %v158
    %v160 = vadd.f32 %v156, %v159
    %s161 = sld [smem:[#allocation2 + $0x1e]]
    %v162 = vstv %s161
    %v163 = vmul.f32 %v51, %v162
    %v164 = vadd.f32 %v160, %v163
    %s165 = sld [smem:[#allocation2 + $0x22]]
    %v166 = vstv %s165
    %v167 = vmul.f32 %v58, %v166
    %v168 = vadd.f32 %v164, %v167
    %s169 = sld [smem:[#allocation2 + $0x26]]
    %v170 = vstv %s169
    %v171 = vmul.f32 %v65, %v170
    %v172 = vadd.f32 %v168, %v171
    %s173 = sld [smem:[#allocation2 + $0x2a]]
    %v174 = vstv %s173
    %v175 = vmul.f32 %v72, %v174
    %v176 = vadd.f32 %v172, %v175
    %s177 = sld [smem:[#allocation2 + $0x2e]]
    %v178 = vstv %s177
    %v179 = vmul.f32 %v79, %v178
    %v180 = vadd.f32 %v176, %v179
    %s181 = sld [smem:[#allocation2 + $0x32]]
    %v182 = vstv %s181
    %v183 = vadd.f32 %v180, %v182
    %v184 = vmax.f32 %v183, 0.0
    %s185 = sld [smem:[#allocation2 + $0x13]]
    %v186 = vstv %s185
    %v187 = vmul.f32 %v30, %v186
    %s188 = sld [smem:[#allocation2 + $0x17]]
    %v189 = vstv %s188
    %v190 = vmul.f32 %v37, %v189
    %v191 = vadd.f32 %v187, %v190
    %s192 = sld [smem:[#allocation2 + $0x1b]]
    %v193 = vstv %s192
    %v194 = vmul.f32 %v44, %v193
    %v195 = vadd.f32 %v191, %v194
    %s196 = sld [smem:[#allocation2 + $0x1f]]
    %v197 = vstv %s196
    %v198 = vmul.f32 %v51, %v197
    %v199 = vadd.f32 %v195, %v198
    %s200 = sld [smem:[#allocation2 + $0x23]]
    %v201 = vstv %s200
    %v202 = vmul.f32 %v58, %v201
    %v203 = vadd.f32 %v199, %v202
    %s204 = sld [smem:[#allocation2 + $0x27]]
    %v205 = vstv %s204
    %v206 = vmul.f32 %v65, %v205
    %v207 = vadd.f32 %v203, %v206
    %s208 = sld [smem:[#allocation2 + $0x2b]]
    %v209 = vstv %s208
    %v210 = vmul.f32 %v72, %v209
    %v211 = vadd.f32 %v207, %v210
    %s212 = sld [smem:[#allocation2 + $0x2f]]
    %v213 = vstv %s212
    %v214 = vmul.f32 %v79, %v213
    %v215 = vadd.f32 %v211, %v214
    %s216 = sld [smem:[#allocation2 + $0x33]]
    %v217 = vstv %s216
    %v218 = vadd.f32 %v215, %v217
    %v219 = vmax.f32 %v218, 0.0
    %s220 = sld [smem:[#allocation2 + $0x34]]
    %v221 = vstv %s220
    %v222 = vmul.f32 %v114, %v221
    %s223 = sld [smem:[#allocation2 + $0x36]]
    %v224 = vstv %s223
    %v225 = vmul.f32 %v149, %v224
    %v226 = vadd.f32 %v222, %v225
    %s227 = sld [smem:[#allocation2 + $0x38]]
    %v228 = vstv %s227
    %v229 = vmul.f32 %v184, %v228
    %v230 = vadd.f32 %v226, %v229
    %s231 = sld [smem:[#allocation2 + $0x3a]]
    %v232 = vstv %s231
    %v233 = vmul.f32 %v219, %v232
    %v234 = vadd.f32 %v230, %v233
    %s235 = sld [smem:[#allocation2 + $0x3c]]
    %v236 = vstv %s235
    %v237 = vadd.f32 %v234, %v236
    %v238 = vand.u32 2147483647, %v237
    %v239 = vsub.f32 0.0, %v238
    %v240 = vmul.f32 %v239, 1.442695
    %v241 = vpow.pop %v240
    %vm242 = vcmp.ge.f32.partialorder %v237, 0.0
    %v243 = vsel %vm242, 1.0, %v241
    %v244 = vadd.f32 %v241, 1.0
    %v245 = vrcp.pop %v244
    %v246 = vmul.f32 %v243, %v245
    %247 = vst [vmem:[#allocation5] sm:$0x1] %v246
    %s248 = sld [smem:[#allocation2 + $0x35]]
    %v249 = vstv %s248
    %v250 = vmul.f32 %v114, %v249
    %s251 = sld [smem:[#allocation2 + $0x37]]
    %v252 = vstv %s251
    %v253 = vmul.f32 %v149, %v252
    %v254 = vadd.f32 %v250, %v253
    %s255 = sld [smem:[#allocation2 + $0x39]]
    %v256 = vstv %s255
    %v257 = vmul.f32 %v184, %v256
    %v258 = vadd.f32 %v254, %v257
    %s259 = sld [smem:[#allocation2 + $0x3b]]
    %v260 = vstv %s259
    %v261 = vmul.f32 %v219, %v260
    %v262 = vadd.f32 %v258, %v261
    %s263 = sld [smem:[#allocation2 + $0x3d]]
    %v264 = vstv %s263
    %v265 = vadd.f32 %v262, %v264
    %v266 = vand.u32 2147483647, %v265
    %v267 = vsub.f32 0.0, %v266
    %v268 = vmul.f32 %v267, 1.442695
    %v269 = vpow.pop %v268
    %vm270 = vcmp.ge.f32.partialorder %v265, 0.0
    %v271 = vsel %vm270, 1.0, %v269
    %v272 = vadd.f32 %v269, 1.0
    %v273 = vrcp.pop %v272
    %v274 = vmul.f32 %v271, %v273
    %275 = vst [vmem:[#allocation5 + $0x1] sm:$0x1] %v274
    // Predicated region
    $region14: #{tpu_custom_call.1} parent=1 // pred_check
      _
    $region15: #{tpu_custom_call.1} parent=1 // pred_check_branch
      %277 = sbr.rel (0) target = $region17
    $region16: #{tpu_custom_call.1} parent=1 // pred_region
      %s279 = ssub.s32 32, 32
      %280 = vsyncadd [#allocation3], %s279
      %s282 = sshll.u32 [#allocation5], 4
      %s283 = int_to_ptr.vmem [resolvable:$true] %s282
      %285 = dma.vmem_to_hbm [thread:$0]  %s283, 32, %s2, [#allocation3]
    $region17: #{tpu_custom_call.1} parent=1 // pred_fallthru
      _
    // Predicated region
    $region18: #{tpu_custom_call.1} parent=1 // pred_check
      _
    $region19: #{tpu_custom_call.1} parent=1 // pred_check_branch
      %287 = sbr.rel (0) target = $region21
    $region20: #{tpu_custom_call.1} parent=1 // pred_region
      %288 = dma.done [#allocation3], 32
    $region21: #{tpu_custom_call.1} parent=1 // pred_fallthru
      _
    %289 = vsyncpa [#allocation3], 1
    %290 = vsyncpa [#allocation4], 1

</llo_original>
